<compile_context>
chip_gen: v5e
topology: v5e:2x2
jax: 0.10.0
libtpu: 0.0.40
codegen_flags: <defaults>
</compile_context>

<pallas_src>
import jax
import jax.numpy as jnp
from jax.experimental import pallas as pl
from jax.experimental.pallas import tpu as pltpu


# Weight-stack size (bf16 bytes) above which we fall back to streaming
# weights per block instead of keeping the whole stack resident in VMEM.
# 24 MiB leaves headroom under v7x's 32 MiB scoped-VMEM default.
_RESIDENT_WEIGHT_BYTES_LIMIT = 24 * 1024 * 1024


# ---------------------------------------------------------------------------
# Fast path: whole weight stack resident in VMEM, block chain unrolled
# inside a single kernel invocation (no grid).
# ---------------------------------------------------------------------------
def _seq_resident_kernel(x_ref, t_ref, w_ref, b_ref, o_ref):
    """x_ref/t_ref: (B, D) f32; w_ref: (N, D, D) bf16; b_ref: (N, 1, D) f32;
    o_ref: (B, D)."""
    num_blocks = w_ref.shape[0]
    acc = x_ref[...].astype(jnp.float32)
    t32 = t_ref[...].astype(jnp.float32)      # hoisted once, not per block
    for i in range(num_blocks):               # static unroll (N known at trace time)
        h = acc + t32                          # conditioning add (VPU, f32)
        y = jnp.dot(                           # MXU: bf16 operands, f32 accum
            h.astype(jnp.bfloat16),
            w_ref[i],                          # already bf16 — no in-kernel cast
            preferred_element_type=jnp.float32,
        )
        y = y + b_ref[i].astype(jnp.float32)   # bias add (f32)
        acc = y * jax.nn.sigmoid(y)            # SiLU (EUP sigmoid + VPU mul, f32)
    o_ref[...] = acc.astype(o_ref.dtype)


def _forward_resident(x, t, w_bf16, b_stack):
    B, D = x.shape
    vmem_spec = pl.BlockSpec(memory_space=pltpu.MemorySpace.VMEM)
    return pl.pallas_call(
        _seq_resident_kernel,
        out_shape=jax.ShapeDtypeStruct((B, D), x.dtype),
        in_specs=[vmem_spec, vmem_spec, vmem_spec, vmem_spec],
        out_specs=vmem_spec,
    )(x, t, w_bf16, b_stack)


# ---------------------------------------------------------------------------
# Fallback path (large num_blocks * D^2): stream one weight tile per grid
# step, running activation carried in a VMEM scratch accumulator.
# ---------------------------------------------------------------------------
def _seq_stream_kernel(x_ref, t_ref, w_ref, b_ref, o_ref, acc_ref):
    """One grid step == one block.  x/t/out/bias resident; W streamed."""
    blk = pl.program_id(0)

    @pl.when(blk == 0)
    def _():
        acc_ref[...] = x_ref[...].astype(jnp.float32)

    h = acc_ref[...] + t_ref[...].astype(jnp.float32)
    y = jnp.dot(
        h.astype(jnp.bfloat16),
        w_ref[...],                            # streamed, already bf16
        preferred_element_type=jnp.float32,
    )
    y = y + b_ref[blk].astype(jnp.float32)     # bias stack resident (N,1,D)
    acc_ref[...] = y * jax.nn.sigmoid(y)

    @pl.when(blk == pl.num_programs(0) - 1)
    def _():
        o_ref[...] = acc_ref[...].astype(o_ref.dtype)


def _forward_streaming(x, t, w_bf16, b_stack):
    B, D = x.shape
    num_blocks = w_bf16.shape[0]
    w_buffering = pl.Buffered(3) if num_blocks >= 3 else pl.Buffered(2)
    return pl.pallas_call(
        _seq_stream_kernel,
        out_shape=jax.ShapeDtypeStruct((B, D), x.dtype),
        grid_spec=pltpu.PrefetchScalarGridSpec(
            num_scalar_prefetch=0,
            grid=(num_blocks,),
            in_specs=[
                # x and t: constant block index -> resident in VMEM.
                pl.BlockSpec((B, D), lambda blk: (0, 0)),
                pl.BlockSpec((B, D), lambda blk: (0, 0)),
                # W_i: streamed per block, 3-deep buffered.
                pl.BlockSpec((None, D, D), lambda blk: (blk, 0, 0),
                             pipeline_mode=w_buffering),
                # bias stack: one resident load (tiny), not a per-step DMA.
                pl.BlockSpec((num_blocks, 1, D), lambda blk: (0, 0, 0)),
            ],
            out_specs=pl.BlockSpec((B, D), lambda blk: (0, 0)),
            scratch_shapes=[pltpu.VMEM((B, D), jnp.float32)],
        ),
        compiler_params=pltpu.CompilerParams(
            dimension_semantics=("arbitrary",),
        ),
    )(x, t, w_bf16, b_stack)


@jax.jit
def sequential_forward(x, t, w_stack, b_stack):
    """Exact semantics of Sequential.forward: chain blocks, passing the same
    extra arg (t) to every block — fused into a single pallas_call."""
    num_blocks, d_in, d_out = w_stack.shape
    w_bf16 = w_stack.astype(jnp.bfloat16)      # no-op if params already bf16
    weight_bytes = num_blocks * d_in * d_out * 2
    if weight_bytes <= _RESIDENT_WEIGHT_BYTES_LIMIT:
        return _forward_resident(x, t, w_bf16, b_stack)
    return _forward_streaming(x, t, w_bf16, b_stack)


def _reference_forward(x, t, w_stack, b_stack):
    """Pure-JAX reference with identical numerics (bf16 MXU operands,
    f32 accumulation and elementwise math)."""
    acc = x.astype(jnp.float32)
    t32 = t.astype(jnp.float32)
    w_bf16 = w_stack.astype(jnp.bfloat16)
    for i in range(w_stack.shape[0]):
        h = acc + t32
        y = jnp.dot(
            h.astype(jnp.bfloat16),
            w_bf16[i],
            preferred_element_type=jnp.float32,
        )
        y = y + b_stack[i].astype(jnp.float32)
        acc = y * jax.nn.sigmoid(y)
    return acc.astype(x.dtype)


def _init_params(key, num_blocks, dim):
    kw, kb = jax.random.split(key)
    # Weights stored in bf16 (MXU-native); cast-to-bf16 rounding happens once
    # here, never per kernel call.
    w_stack = (
        jax.random.normal(kw, (num_blocks, dim, dim), jnp.float32)
        / jnp.sqrt(jnp.float32(dim))
    ).astype(jnp.bfloat16)
    b_stack = jax.random.normal(kb, (num_blocks, 1, dim), jnp.float32) * 0.01
    return w_stack, b_stack


if __name__ == "__main__":
    B, D = 8, 128          # batch=8, hidden=128 (lane-dense feature dim)
    NUM_BLOCKS = 3

    key = jax.random.PRNGKey(0)
    kx, kt, kp = jax.random.split(key, 3)
    x = jax.random.normal(kx, (B, D), jnp.float32)
    t = jax.random.normal(kt, (B, D), jnp.float32)   # extra *args for every block
    w_stack, b_stack = _init_params(kp, NUM_BLOCKS, D)

    out = jax.block_until_ready(sequential_forward(x, t, w_stack, b_stack))

    ref = _reference_forward(x, t, w_stack, b_stack)
    assert out.shape == (B, D)
    assert jnp.allclose(out, ref, atol=2e-3, rtol=2e-3), (
        float(jnp.max(jnp.abs(out - ref)))
    )

    print("KERNEL_OK")
</pallas_src>

<mosaic_0001>
module attributes {stable_mosaic.version = 11 : i64} {
  func.func @_seq_resident_kernel(%arg0: memref<8x128xf32, #tpu.memory_space<vmem>>, %arg1: memref<8x128xf32, #tpu.memory_space<vmem>>, %arg2: memref<3x128x128xbf16, #tpu.memory_space<vmem>>, %arg3: memref<3x1x128xf32, #tpu.memory_space<vmem>>, %arg4: memref<8x128xf32, #tpu.memory_space<vmem>>) attributes {dimension_semantics = [], scalar_prefetch = 0 : i64, scratch_operands = 0 : i64, tpu.core_type = #tpu.core_type<tc>} {
    %c0 = arith.constant 0 : index
    %c0_0 = arith.constant 0 : index
    %0 = vector.load %arg0[%c0, %c0_0] : memref<8x128xf32, #tpu.memory_space<vmem>>, vector<8x128xf32>
    %c0_1 = arith.constant 0 : index
    %c0_2 = arith.constant 0 : index
    %1 = vector.load %arg1[%c0_1, %c0_2] : memref<8x128xf32, #tpu.memory_space<vmem>>, vector<8x128xf32>
    %2 = arith.addf %0, %1 : vector<8x128xf32>
    %3 = arith.truncf %2 : vector<8x128xf32> to vector<8x128xbf16>
    %c0_3 = arith.constant 0 : index
    %c0_4 = arith.constant 0 : index
    %c0_5 = arith.constant 0 : index
    %4 = vector.load %arg2[%c0_3, %c0_4, %c0_5] : memref<3x128x128xbf16, #tpu.memory_space<vmem>>, vector<1x128x128xbf16>
    %5 = vector.shape_cast %4 : vector<1x128x128xbf16> to vector<128x128xbf16>
    %cst = arith.constant dense<0.000000e+00> : vector<8x128xf32>
    %6 = tpu.matmul %3, %5, %cst {dimension_numbers = #tpu.dot_dimension_numbers<[1], [0], [0], [1], [0, 0, 1, 1], [], []>} : vector<8x128xbf16>, vector<128x128xbf16>, vector<8x128xf32> -> vector<8x128xf32>
    %c0_6 = arith.constant 0 : index
    %c0_7 = arith.constant 0 : index
    %c0_8 = arith.constant 0 : index
    %7 = vector.load %arg3[%c0_6, %c0_7, %c0_8] : memref<3x1x128xf32, #tpu.memory_space<vmem>>, vector<1x1x128xf32>
    %8 = vector.shape_cast %7 : vector<1x1x128xf32> to vector<1x128xf32>
    %9 = vector.broadcast %8 : vector<1x128xf32> to vector<8x128xf32>
    %10 = arith.addf %6, %9 : vector<8x128xf32>
    %11 = arith.negf %10 : vector<8x128xf32>
    %12 = math.exp %11 : vector<8x128xf32>
    %cst_9 = arith.constant 1.000000e+00 : f32
    %13 = vector.broadcast %cst_9 : f32 to vector<8x128xf32>
    %14 = arith.addf %13, %12 : vector<8x128xf32>
    %15 = arith.divf %13, %14 : vector<8x128xf32>
    %16 = arith.mulf %10, %15 : vector<8x128xf32>
    %17 = arith.addf %16, %1 : vector<8x128xf32>
    %18 = arith.truncf %17 : vector<8x128xf32> to vector<8x128xbf16>
    %c1 = arith.constant 1 : index
    %c0_10 = arith.constant 0 : index
    %c0_11 = arith.constant 0 : index
    %19 = vector.load %arg2[%c1, %c0_10, %c0_11] : memref<3x128x128xbf16, #tpu.memory_space<vmem>>, vector<1x128x128xbf16>
    %20 = vector.shape_cast %19 : vector<1x128x128xbf16> to vector<128x128xbf16>
    %cst_12 = arith.constant dense<0.000000e+00> : vector<8x128xf32>
    %21 = tpu.matmul %18, %20, %cst_12 {dimension_numbers = #tpu.dot_dimension_numbers<[1], [0], [0], [1], [0, 0, 1, 1], [], []>} : vector<8x128xbf16>, vector<128x128xbf16>, vector<8x128xf32> -> vector<8x128xf32>
    %c1_13 = arith.constant 1 : index
    %c0_14 = arith.constant 0 : index
    %c0_15 = arith.constant 0 : index
    %22 = vector.load %arg3[%c1_13, %c0_14, %c0_15] : memref<3x1x128xf32, #tpu.memory_space<vmem>>, vector<1x1x128xf32>
    %23 = vector.shape_cast %22 : vector<1x1x128xf32> to vector<1x128xf32>
    %24 = vector.broadcast %23 : vector<1x128xf32> to vector<8x128xf32>
    %25 = arith.addf %21, %24 : vector<8x128xf32>
    %26 = arith.negf %25 : vector<8x128xf32>
    %27 = math.exp %26 : vector<8x128xf32>
    %cst_16 = arith.constant 1.000000e+00 : f32
    %28 = vector.broadcast %cst_16 : f32 to vector<8x128xf32>
    %29 = arith.addf %28, %27 : vector<8x128xf32>
    %30 = arith.divf %28, %29 : vector<8x128xf32>
    %31 = arith.mulf %25, %30 : vector<8x128xf32>
    %32 = arith.addf %31, %1 : vector<8x128xf32>
    %33 = arith.truncf %32 : vector<8x128xf32> to vector<8x128xbf16>
    %c2 = arith.constant 2 : index
    %c0_17 = arith.constant 0 : index
    %c0_18 = arith.constant 0 : index
    %34 = vector.load %arg2[%c2, %c0_17, %c0_18] : memref<3x128x128xbf16, #tpu.memory_space<vmem>>, vector<1x128x128xbf16>
    %35 = vector.shape_cast %34 : vector<1x128x128xbf16> to vector<128x128xbf16>
    %cst_19 = arith.constant dense<0.000000e+00> : vector<8x128xf32>
    %36 = tpu.matmul %33, %35, %cst_19 {dimension_numbers = #tpu.dot_dimension_numbers<[1], [0], [0], [1], [0, 0, 1, 1], [], []>} : vector<8x128xbf16>, vector<128x128xbf16>, vector<8x128xf32> -> vector<8x128xf32>
    %c2_20 = arith.constant 2 : index
    %c0_21 = arith.constant 0 : index
    %c0_22 = arith.constant 0 : index
    %37 = vector.load %arg3[%c2_20, %c0_21, %c0_22] : memref<3x1x128xf32, #tpu.memory_space<vmem>>, vector<1x1x128xf32>
    %38 = vector.shape_cast %37 : vector<1x1x128xf32> to vector<1x128xf32>
    %39 = vector.broadcast %38 : vector<1x128xf32> to vector<8x128xf32>
    %40 = arith.addf %36, %39 : vector<8x128xf32>
    %41 = arith.negf %40 : vector<8x128xf32>
    %42 = math.exp %41 : vector<8x128xf32>
    %cst_23 = arith.constant 1.000000e+00 : f32
    %43 = vector.broadcast %cst_23 : f32 to vector<8x128xf32>
    %44 = arith.addf %43, %42 : vector<8x128xf32>
    %45 = arith.divf %43, %44 : vector<8x128xf32>
    %46 = arith.mulf %40, %45 : vector<8x128xf32>
    %c0_24 = arith.constant 0 : index
    %c0_25 = arith.constant 0 : index
    %47 = vector.load %arg4[%c0_24, %c0_25] : memref<8x128xf32, #tpu.memory_space<vmem>>, vector<8x128xf32>
    tpu.vector_store %arg4[%c0_24, %c0_25], %46 {strides = array<i32>} : memref<8x128xf32, #tpu.memory_space<vmem>>, vector<8x128xf32>,
    return
  }
}

</mosaic_0001>

<llo_original>
// kernel: sequential_forward.1
$region0: #{sequential_forward.1}
  #allocation0 [shape = 'u32[]', space=smem, size = 0x4, offset = 0x4, fixed_abs, tag = 'smem constant byte address 0x4 - core index']
  #allocation1 [shape = 'u32[72,128]{1,0:T(1,128)}', space=vmem, size = 0x9000, scoped, tag = 'internal scratch']
  %s0 = inlined_call_operand.hbm [shape: f32[8,128], index: 0, kind: input, shape index: {}]
  %s1 = inlined_call_operand.hbm [shape: f32[8,128], index: 1, kind: input, shape index: {}]
  %s2 = inlined_call_operand.hbm [shape: bf16[3,128,128], index: 2, kind: input, shape index: {}]
  %s3 = inlined_call_operand.hbm [shape: f32[3,1,128], index: 3, kind: input, shape index: {}]
  %s4 = inlined_call_operand.hbm [shape: f32[8,128], index: 4, kind: output, shape index: {}]
  %s5 = sld [smem:[#allocation0]]
  $region42: #{sequential_forward.1} parent=0
    _
  %s7 = ssub.s32 1, %s5
  %s8 = scalar_select 0, %s7, %s5
  $region1: #{sequential_forward.1} parent=0
    #allocation2 [shape = 'u8[4096]{0}', space=vmem, size = 0x1000, scoped, tag = 'input window, operand 0, single buffered']
    #allocation3 [shape = 's32[1]{0}', space=sflag, size = 0x4, scoped, tag = 'scoped memory for sequential_forward.1']
    #allocation4 [shape = 's32[1]{0}', space=sflag, size = 0x4, scoped, tag = 'scoped memory for sequential_forward.1']
    #allocation5 [shape = 'u8[4096]{0}', space=vmem, size = 0x1000, scoped, tag = 'input window, operand 1, single buffered']
    #allocation6 [shape = 's32[1]{0}', space=sflag, size = 0x4, scoped, tag = 'scoped memory for sequential_forward.1']
    #allocation7 [shape = 'u8[98304]{0}', space=vmem, size = 0x18000, scoped, tag = 'input window, operand 2, single buffered']
    #allocation8 [shape = 'u8[1536]{0}', space=vmem, size = 0x800, scoped, tag = 'input window, operand 3, single buffered']
    #allocation9 [shape = 's32[1]{0}', space=sflag, size = 0x4, scoped, tag = 'scoped memory for sequential_forward.1']
    #allocation10 [shape = 'u8[4096]{0}', space=vmem, size = 0x1000, scoped, tag = 'output window, operand 0, single buffered']
    %9 = vsyncpa [#allocation3], 0
    %10 = vsyncpa [#allocation6], 0
    %11 = vsyncpa [#allocation9], 0
    %12 = vsyncpa [#allocation4], 0
    // Predicated region
    $region2: #{sequential_forward.1} parent=1 // pred_check
      _
    $region3: #{sequential_forward.1} parent=1 // pred_check_branch
      %14 = sbr.rel (0) target = $region5
    $region4: #{sequential_forward.1} parent=1 // pred_region
      %16 = vsyncadd [#allocation3], 0
      %s18 = sshll.u32 %s0, 4
      %s19 = int_to_ptr.hbm [resolvable:$true] %s18
      %s20 = sshll.u32 [#allocation2], 4
      %s21 = int_to_ptr.vmem [resolvable:$true] %s20
      %23 = dma.hbm_to_vmem [thread:$0]  %s19, 128, %s21, [#allocation3]
    $region5: #{sequential_forward.1} parent=1 // pred_fallthru
      _
    // Predicated region
    $region6: #{sequential_forward.1} parent=1 // pred_check
      _
    $region7: #{sequential_forward.1} parent=1 // pred_check_branch
      %25 = sbr.rel (0) target = $region9
    $region8: #{sequential_forward.1} parent=1 // pred_region
      %27 = vsyncadd [#allocation6], 0
      %s29 = sshll.u32 %s1, 4
      %s30 = int_to_ptr.hbm [resolvable:$true] %s29
      %s31 = sshll.u32 [#allocation5], 4
      %s32 = int_to_ptr.vmem [resolvable:$true] %s31
      %34 = dma.hbm_to_vmem [thread:$0]  %s30, 128, %s32, [#allocation6]
    $region9: #{sequential_forward.1} parent=1 // pred_fallthru
      _
    // Predicated region
    $region10: #{sequential_forward.1} parent=1 // pred_check
      _
    $region11: #{sequential_forward.1} parent=1 // pred_check_branch
      %36 = sbr.rel (0) target = $region13
    $region12: #{sequential_forward.1} parent=1 // pred_region
      %38 = vsyncadd [#allocation6], 0
      %s39 = sshll.u32 %s2, 4
      %s40 = int_to_ptr.hbm [resolvable:$true] %s39
      %s41 = sshll.u32 [#allocation7], 4
      %s42 = int_to_ptr.vmem [resolvable:$true] %s41
      %47 = dma.hbm_to_vmem [thread:$0]  %s40, 3072, %s42, [#allocation6], 64, 64, 4
    $region13: #{sequential_forward.1} parent=1 // pred_fallthru
      _
    // Predicated region
    $region14: #{sequential_forward.1} parent=1 // pred_check
      _
    $region15: #{sequential_forward.1} parent=1 // pred_check_branch
      %49 = sbr.rel (0) target = $region17
    $region16: #{sequential_forward.1} parent=1 // pred_region
      %51 = vsyncadd [#allocation9], 0
      %s52 = sshll.u32 %s3, 4
      %s53 = int_to_ptr.hbm [resolvable:$true] %s52
      %s54 = sshll.u32 [#allocation8], 4
      %s55 = int_to_ptr.vmem [resolvable:$true] %s54
      %60 = dma.hbm_to_vmem [thread:$0]  %s53, 48, %s55, [#allocation9], 16, 16, 1
    $region17: #{sequential_forward.1} parent=1 // pred_fallthru
      _
    // Predicated region
    $region18: #{sequential_forward.1} parent=1 // pred_check
      _
    $region19: #{sequential_forward.1} parent=1 // pred_check_branch
      %62 = sbr.rel (0) target = $region21
    $region20: #{sequential_forward.1} parent=1 // pred_region
      %64 = dma.done [#allocation3], 128
    $region21: #{sequential_forward.1} parent=1 // pred_fallthru
      _
    // Predicated region
    $region22: #{sequential_forward.1} parent=1 // pred_check
      _
    $region23: #{sequential_forward.1} parent=1 // pred_check_branch
      %66 = sbr.rel (0) target = $region25
    $region24: #{sequential_forward.1} parent=1 // pred_region
      %68 = dma.done [#allocation6], 128
    $region25: #{sequential_forward.1} parent=1 // pred_fallthru
      _
    // Predicated region
    $region26: #{sequential_forward.1} parent=1 // pred_check
      _
    $region27: #{sequential_forward.1} parent=1 // pred_check_branch
      %70 = sbr.rel (0) target = $region29
    $region28: #{sequential_forward.1} parent=1 // pred_region
      %72 = dma.done [#allocation6], 3072
    $region29: #{sequential_forward.1} parent=1 // pred_fallthru
      _
    // Predicated region
    $region30: #{sequential_forward.1} parent=1 // pred_check
      _
    $region31: #{sequential_forward.1} parent=1 // pred_check_branch
      %74 = sbr.rel (0) target = $region33
    $region32: #{sequential_forward.1} parent=1 // pred_region
      %76 = dma.done [#allocation9], 48
    $region33: #{sequential_forward.1} parent=1 // pred_fallthru
      _
    %v77 = vld [vmem:[#allocation2] sm:$0xff]
    %v78 = vld [vmem:[#allocation5] sm:$0xff]
    %v79 = vadd.f32 %v77, %v78
    %v80 = vpack.c.bf16 %v79, %v79
    %v81 = vld [vmem:[#allocation7] sm:$0xf]
    %v82 = vld [vmem:[#allocation7 + $0x4] sm:$0xf]
    %v83 = vld [vmem:[#allocation7 + $0x8] sm:$0xf]
    %v84 = vld [vmem:[#allocation7 + $0xc] sm:$0xf]
    %v85 = vld [vmem:[#allocation7 + $0x10] sm:$0xf]
    %v86 = vld [vmem:[#allocation7 + $0x14] sm:$0xf]
    %v87 = vld [vmem:[#allocation7 + $0x18] sm:$0xf]
    %v88 = vld [vmem:[#allocation7 + $0x1c] sm:$0xf]
    %v89 = vld [vmem:[#allocation7 + $0x20] sm:$0xf]
    %v90 = vld [vmem:[#allocation7 + $0x24] sm:$0xf]
    %v91 = vld [vmem:[#allocation7 + $0x28] sm:$0xf]
    %v92 = vld [vmem:[#allocation7 + $0x2c] sm:$0xf]
    %v93 = vld [vmem:[#allocation7 + $0x30] sm:$0xf]
    %v94 = vld [vmem:[#allocation7 + $0x34] sm:$0xf]
    %v95 = vld [vmem:[#allocation7 + $0x38] sm:$0xf]
    %v96 = vld [vmem:[#allocation7 + $0x3c] sm:$0xf]
    %v97 = vld [vmem:[#allocation8] sm:$0x1]
    %v99 = vperm.slane %v97, 0
    %v117 = vunpack.c.l.b16 %v81
    %v118 = vunpack.c.l.b16 %v82
    %v119 = vunpack.c.l.b16 %v83
    %v120 = vunpack.c.l.b16 %v84
    %v121 = vunpack.c.l.b16 %v85
    %v122 = vunpack.c.l.b16 %v86
    %v123 = vunpack.c.l.b16 %v87
    %v124 = vunpack.c.l.b16 %v88
    %v125 = vunpack.c.l.b16 %v89
    %v126 = vunpack.c.l.b16 %v90
    %v127 = vunpack.c.l.b16 %v91
    %v128 = vunpack.c.l.b16 %v92
    %v129 = vunpack.c.l.b16 %v93
    %v130 = vunpack.c.l.b16 %v94
    %v131 = vunpack.c.l.b16 %v95
    %v132 = vunpack.c.l.b16 %v96
    %v133 = vpack.c.b16 %v118, %v117
    %v134 = vpack.c.b16 %v120, %v119
    %v135 = vpack.c.b16 %v122, %v121
    %v136 = vpack.c.b16 %v124, %v123
    %v137 = vpack.c.b16 %v126, %v125
    %v138 = vpack.c.b16 %v128, %v127
    %v139 = vpack.c.b16 %v130, %v129
    %v140 = vpack.c.b16 %v132, %v131
    %149 = vmatpush.bf16.msra.mxu0 %v140
    %150 = vmatpush.bf16.msra.mxu0 %v139
    %151 = vmatpush.bf16.msra.mxu0 %v138
    %152 = vmatpush.bf16.msra.mxu0 %v137
    %153 = vmatpush.bf16.msra.mxu0 %v136
    %154 = vmatpush.bf16.msra.mxu0 %v135
    %155 = vmatpush.bf16.msra.mxu0 %v134
    %156 = vmatpush.bf16.msra.mxu0 %v133
    %157 = vmatmul.bf16.gmra.mxu0 %v80
    %v158 = vpop.f32.mrf.mxu0
    %v159 = vadd.f32 %v99, %v158
    %v160 = vpop.f32.mrf.mxu0
    %161 = vdwg.mxu0
    %v162 = vxor.u32 %v159, 2147483648
    %v163 = vmul.f32 %v162, 1.442695
    %v164 = vpow.pop %v163
    %v165 = vadd.f32 %v164, 1.0
    %v166 = vrcp.pop %v165
    %v167 = vmul.f32 %v165, %v166
    %v168 = vsub.f32 1.0, %v167
    %v169 = vmul.f32 %v166, %v168
    %v170 = vadd.f32 %v166, %v169
    %vm171 = vweird.f32 %v165
    %vm172 = vweird.f32 %v166
    %vm173 = vmor %vm171, %vm172
    %v174 = vsel %vm173, %v166, %v170
    %v175 = vand.u32 2147483647, %v165
    %vm176 = vcmp.eq.f32.partialorder %v175, 8.507059e+37
    %v177 = vand.u32 %v165, 2147483648
    %v178 = vor.u32 1.1754944e-38, %v177
    %v179 = vsel %vm176, %v178, %v174
    %v180 = vmul.f32 1.0, %v179
    %v181 = vmul.f32 %v159, %v180
    %v182 = vadd.f32 %v181, %v78
    %v183 = vpack.c.bf16 %v182, %v182
    %s184 = scalar_lea.vmem [#allocation7], 64
    %v185 = vld [vmem:[%s184] sm:$0xf]
    %v186 = vld [vmem:[%s184 + $0x4] sm:$0xf]
    %v187 = vld [vmem:[%s184 + $0x8] sm:$0xf]
    %v188 = vld [vmem:[%s184 + $0xc] sm:$0xf]
    %v189 = vld [vmem:[%s184 + $0x10] sm:$0xf]
    %v190 = vld [vmem:[%s184 + $0x14] sm:$0xf]
    %v191 = vld [vmem:[%s184 + $0x18] sm:$0xf]
    %v192 = vld [vmem:[%s184 + $0x1c] sm:$0xf]
    %v193 = vld [vmem:[%s184 + $0x20] sm:$0xf]
    %v194 = vld [vmem:[%s184 + $0x24] sm:$0xf]
    %v195 = vld [vmem:[%s184 + $0x28] sm:$0xf]
    %v196 = vld [vmem:[%s184 + $0x2c] sm:$0xf]
    %v197 = vld [vmem:[%s184 + $0x30] sm:$0xf]
    %v198 = vld [vmem:[%s184 + $0x34] sm:$0xf]
    %v199 = vld [vmem:[%s184 + $0x38] sm:$0xf]
    %v200 = vld [vmem:[%s184 + $0x3c] sm:$0xf]
    %s201 = scalar_lea.vmem [#allocation8], 1
    %v202 = vld [vmem:[%s201] sm:$0x1]
    %v204 = vperm.slane %v202, 0
    %v222 = vunpack.c.l.b16 %v185
    %v223 = vunpack.c.l.b16 %v186
    %v224 = vunpack.c.l.b16 %v187
    %v225 = vunpack.c.l.b16 %v188
    %v226 = vunpack.c.l.b16 %v189
    %v227 = vunpack.c.l.b16 %v190
    %v228 = vunpack.c.l.b16 %v191
    %v229 = vunpack.c.l.b16 %v192
    %v230 = vunpack.c.l.b16 %v193
    %v231 = vunpack.c.l.b16 %v194
    %v232 = vunpack.c.l.b16 %v195
    %v233 = vunpack.c.l.b16 %v196
    %v234 = vunpack.c.l.b16 %v197
    %v235 = vunpack.c.l.b16 %v198
    %v236 = vunpack.c.l.b16 %v199
    %v237 = vunpack.c.l.b16 %v200
    %v238 = vpack.c.b16 %v223, %v222
    %v239 = vpack.c.b16 %v225, %v224
    %v240 = vpack.c.b16 %v227, %v226
    %v241 = vpack.c.b16 %v229, %v228
    %v242 = vpack.c.b16 %v231, %v230
    %v243 = vpack.c.b16 %v233, %v232
    %v244 = vpack.c.b16 %v235, %v234
    %v245 = vpack.c.b16 %v237, %v236
    %254 = vmatpush.bf16.msra.mxu0 %v245
    %255 = vmatpush.bf16.msra.mxu0 %v244
    %256 = vmatpush.bf16.msra.mxu0 %v243
    %257 = vmatpush.bf16.msra.mxu0 %v242
    %258 = vmatpush.bf16.msra.mxu0 %v241
    %259 = vmatpush.bf16.msra.mxu0 %v240
    %260 = vmatpush.bf16.msra.mxu0 %v239
    %261 = vmatpush.bf16.msra.mxu0 %v238
    %262 = vmatmul.bf16.gmra.mxu0 %v183
    %v263 = vpop.f32.mrf.mxu0
    %v264 = vadd.f32 %v204, %v263
    %v265 = vpop.f32.mrf.mxu0
    %266 = vdwg.mxu0
    %v267 = vxor.u32 %v264, 2147483648
    %v268 = vmul.f32 %v267, 1.442695
    %v269 = vpow.pop %v268
    %v270 = vadd.f32 %v269, 1.0
    %v271 = vrcp.pop %v270
    %v272 = vmul.f32 %v270, %v271
    %v273 = vsub.f32 1.0, %v272
    %v274 = vmul.f32 %v271, %v273
    %v275 = vadd.f32 %v271, %v274
    %vm276 = vweird.f32 %v270
    %vm277 = vweird.f32 %v271
    %vm278 = vmor %vm276, %vm277
    %v279 = vsel %vm278, %v271, %v275
    %v280 = vand.u32 2147483647, %v270
    %vm281 = vcmp.eq.f32.partialorder %v280, 8.507059e+37
    %v282 = vand.u32 %v270, 2147483648
    %v283 = vor.u32 1.1754944e-38, %v282
    %v284 = vsel %vm281, %v283, %v279
    %v285 = vmul.f32 1.0, %v284
    %v286 = vmul.f32 %v264, %v285
    %v287 = vadd.f32 %v286, %v78
    %v288 = vpack.c.bf16 %v287, %v287
    %s289 = scalar_lea.vmem [#allocation7], 128
    %v290 = vld [vmem:[%s289] sm:$0xf]
    %v291 = vld [vmem:[%s289 + $0x4] sm:$0xf]
    %v292 = vld [vmem:[%s289 + $0x8] sm:$0xf]
    %v293 = vld [vmem:[%s289 + $0xc] sm:$0xf]
    %v294 = vld [vmem:[%s289 + $0x10] sm:$0xf]
    %v295 = vld [vmem:[%s289 + $0x14] sm:$0xf]
    %v296 = vld [vmem:[%s289 + $0x18] sm:$0xf]
    %v297 = vld [vmem:[%s289 + $0x1c] sm:$0xf]
    %v298 = vld [vmem:[%s289 + $0x20] sm:$0xf]
    %v299 = vld [vmem:[%s289 + $0x24] sm:$0xf]
    %v300 = vld [vmem:[%s289 + $0x28] sm:$0xf]
    %v301 = vld [vmem:[%s289 + $0x2c] sm:$0xf]
    %v302 = vld [vmem:[%s289 + $0x30] sm:$0xf]
    %v303 = vld [vmem:[%s289 + $0x34] sm:$0xf]
    %v304 = vld [vmem:[%s289 + $0x38] sm:$0xf]
    %v305 = vld [vmem:[%s289 + $0x3c] sm:$0xf]
    %s306 = scalar_lea.vmem [#allocation8], 2
    %v307 = vld [vmem:[%s306] sm:$0x1]
    %v309 = vperm.slane %v307, 0
    %v327 = vunpack.c.l.b16 %v290
    %v328 = vunpack.c.l.b16 %v291
    %v329 = vunpack.c.l.b16 %v292
    %v330 = vunpack.c.l.b16 %v293
    %v331 = vunpack.c.l.b16 %v294
    %v332 = vunpack.c.l.b16 %v295
    %v333 = vunpack.c.l.b16 %v296
    %v334 = vunpack.c.l.b16 %v297
    %v335 = vunpack.c.l.b16 %v298
    %v336 = vunpack.c.l.b16 %v299
    %v337 = vunpack.c.l.b16 %v300
    %v338 = vunpack.c.l.b16 %v301
    %v339 = vunpack.c.l.b16 %v302
    %v340 = vunpack.c.l.b16 %v303
    %v341 = vunpack.c.l.b16 %v304
    %v342 = vunpack.c.l.b16 %v305
    %v343 = vpack.c.b16 %v328, %v327
    %v344 = vpack.c.b16 %v330, %v329
    %v345 = vpack.c.b16 %v332, %v331
    %v346 = vpack.c.b16 %v334, %v333
    %v347 = vpack.c.b16 %v336, %v335
    %v348 = vpack.c.b16 %v338, %v337
    %v349 = vpack.c.b16 %v340, %v339
    %v350 = vpack.c.b16 %v342, %v341
    %359 = vmatpush.bf16.msra.mxu0 %v350
    %360 = vmatpush.bf16.msra.mxu0 %v349
    %361 = vmatpush.bf16.msra.mxu0 %v348
    %362 = vmatpush.bf16.msra.mxu0 %v347
    %363 = vmatpush.bf16.msra.mxu0 %v346
    %364 = vmatpush.bf16.msra.mxu0 %v345
    %365 = vmatpush.bf16.msra.mxu0 %v344
    %366 = vmatpush.bf16.msra.mxu0 %v343
    %367 = vmatmul.bf16.gmra.mxu0 %v288
    %v368 = vpop.f32.mrf.mxu0
    %v369 = vadd.f32 %v309, %v368
    %v370 = vpop.f32.mrf.mxu0
    %371 = vdwg.mxu0
    %v372 = vxor.u32 %v369, 2147483648
    %v373 = vmul.f32 %v372, 1.442695
    %v374 = vpow.pop %v373
    %v375 = vadd.f32 %v374, 1.0
    %v376 = vrcp.pop %v375
    %v377 = vmul.f32 %v375, %v376
    %v378 = vsub.f32 1.0, %v377
    %v379 = vmul.f32 %v376, %v378
    %v380 = vadd.f32 %v376, %v379
    %vm381 = vweird.f32 %v375
    %vm382 = vweird.f32 %v376
    %vm383 = vmor %vm381, %vm382
    %v384 = vsel %vm383, %v376, %v380
    %v385 = vand.u32 2147483647, %v375
    %vm386 = vcmp.eq.f32.partialorder %v385, 8.507059e+37
    %v387 = vand.u32 %v375, 2147483648
    %v388 = vor.u32 1.1754944e-38, %v387
    %v389 = vsel %vm386, %v388, %v384
    %v390 = vmul.f32 1.0, %v389
    %v391 = vmul.f32 %v369, %v390
    %392 = vst [vmem:[#allocation10] sm:$0xff] %v391
    // Predicated region
    $region34: #{sequential_forward.1} parent=1 // pred_check
      _
    $region35: #{sequential_forward.1} parent=1 // pred_check_branch
      %394 = sbr.rel (0) target = $region37
    $region36: #{sequential_forward.1} parent=1 // pred_region
      %396 = vsyncadd [#allocation4], 0
      %s398 = sshll.u32 [#allocation10], 4
      %s399 = int_to_ptr.vmem [resolvable:$true] %s398
      %s400 = sshll.u32 %s4, 4
      %s401 = int_to_ptr.hbm [resolvable:$true] %s400
      %403 = dma.vmem_to_hbm [thread:$0]  %s399, 128, %s401, [#allocation4]
    $region37: #{sequential_forward.1} parent=1 // pred_fallthru
      _
    // Predicated region
    $region38: #{sequential_forward.1} parent=1 // pred_check
      _
    $region39: #{sequential_forward.1} parent=1 // pred_check_branch
      %405 = sbr.rel (0) target = $region41
    $region40: #{sequential_forward.1} parent=1 // pred_region
      %407 = dma.done [#allocation4], 128
    $region41: #{sequential_forward.1} parent=1 // pred_fallthru
      _
    %408 = vsyncpa [#allocation3], 1
    %409 = vsyncpa [#allocation6], 1
    %410 = vsyncpa [#allocation9], 1
    %411 = vsyncpa [#allocation4], 1

</llo_original>
